<compile_context>
chip_gen: v7x
topology: tpu7x:2x2x1
jax: 0.10.0
libtpu: 0.0.40
codegen_flags: <defaults>
</compile_context>

<pallas_src>
import jax
import jax.numpy as jnp
import numpy as np
from jax.experimental import pallas as pl
from jax.experimental.pallas import tpu as pltpu

BN_EPS = 1e-5
COS_EPS = 1e-8


def simsiam_kernel(x_ref,
                   wo_wt_ref, wo_b_ref,
                   wpj_wt_ref, wpj_b_ref,
                   wp_wt_ref, wp_b_ref,
                   loss_ref):
    n2 = x_ref.shape[0]
    n = n2 // 2

    def mm(a_bf16, w_t_ref):
        # bf16 operands on the MXU, f32 accumulation.
        return jnp.dot(a_bf16, w_t_ref[...], preferred_element_type=jnp.float32)

    def bn_per_view(z):
        # BatchNorm1d, training mode, identity affine, biased variance.
        # Per-view stats via a layout-free leading-axis reshape (N % 8 == 0),
        # reduced over axis=1.  Fused single-pass stats with a clamp so the
        # f32 cancellation in E[z^2]-mu^2 can never go negative.
        m = z.shape[-1]
        z3 = z.reshape(2, n, m)
        mu = jnp.mean(z3, axis=1, keepdims=True)
        ms = jnp.mean(z3 * z3, axis=1, keepdims=True)
        var = jnp.maximum(ms - mu * mu, 0.0)
        z3 = (z3 - mu) * jax.lax.rsqrt(var + BN_EPS)
        return z3.reshape(n2, m)

    def srelu(z, b_ref):
        # SymReLU(z, b) = relu(z) - relu(2b - z); 2b hoisted (one call/layer).
        two_b = 2.0 * b_ref[...]
        return jnp.maximum(z, 0.0) - jnp.maximum(two_b - z, 0.0)

    # Encoder Wo (bias dropped: identity-affine BN cancels it) + BN1 + SymReLU.
    z = srelu(bn_per_view(mm(x_ref[...], wo_wt_ref)), wo_b_ref)
    # Projector Wproj (bias dropped before BN) + BN2 + SymReLU.
    z = srelu(bn_per_view(mm(z.astype(jnp.bfloat16), wpj_wt_ref)), wpj_b_ref)
    # Predictor Wp (bias kept) -> rows are [p1 ; p2].
    p = mm(z.astype(jnp.bfloat16), wp_wt_ref) + wp_b_ref[...]

    # loss = 0.5*(D(p1, zt) + D(p2, zo)).  Pairing done with sublane-aligned
    # half slices (no concatenate / no data movement); with equal halves
    # 0.5*(mean + mean) == (sum1 + sum2) / (2N).
    def cos_sum(p_half, z_half):
        num = jnp.sum(p_half * z_half, axis=-1, keepdims=True)
        pn = jnp.sum(p_half * p_half, axis=-1, keepdims=True)
        zn = jnp.sum(z_half * z_half, axis=-1, keepdims=True)
        # One rsqrt (EUP) on the product of squared norms; clamping the product
        # is equivalent to max(||p||*||z||, eps) since sqrt is monotone.
        cos = num * jax.lax.rsqrt(jnp.maximum(pn * zn, COS_EPS * COS_EPS))
        return jnp.sum(cos)

    total = cos_sum(p[:n], z[n:]) + cos_sum(p[n:], z[:n])
    loss_ref[...] = jnp.broadcast_to(-(total / jnp.float32(n2)), (1, 1))


def prepare_params(params):
    """One-time parameter preparation (NOT in the per-step hot path):
    transpose weights to (in, out) and cast to bf16 for the MXU; reshape
    biases to (1, m) f32 rows so no glue ops run per forward call."""
    m = params["wo_w"].shape[0]
    f32, bf16 = jnp.float32, jnp.bfloat16
    return (
        jnp.asarray(params["wo_w"], f32).T.astype(bf16),
        jnp.asarray(params["wo_b"], f32).reshape(1, m),
        jnp.asarray(params["wproj_w"], f32).T.astype(bf16),
        jnp.asarray(params["wproj_b"], f32).reshape(1, m),
        jnp.asarray(params["wp_w"], f32).T.astype(bf16),
        jnp.asarray(params["wp_b"], f32).reshape(1, m),
    )


@jax.jit
def simsiam_forward(x1, x2, prepared):
    """x1, x2: (N, p) f32 with N % 8 == 0; prepared: output of prepare_params.
    Returns a scalar loss."""
    n = x1.shape[0]
    assert n % 8 == 0, "N must be a multiple of 8 (sublane-aligned halves)"
    # Stack views and cast to bf16 OUTSIDE the kernel (one fused XLA op);
    # halves input DMA bytes and removes the in-kernel concat copy.
    x = jnp.concatenate([x1, x2], axis=0).astype(jnp.bfloat16)
    args = (x,) + tuple(prepared)
    vmem = pl.BlockSpec(memory_space=pltpu.MemorySpace.VMEM)
    loss = pl.pallas_call(
        simsiam_kernel,
        out_shape=jax.ShapeDtypeStruct((1, 1), jnp.float32),
        in_specs=[vmem] * len(args),
        out_specs=vmem,
        compiler_params=pltpu.CompilerParams(vmem_limit_bytes=64 << 20),
    )(*args)
    return loss[0, 0]


def reference_forward(x1, x2, params):
    """Pure-JAX reference. Mirrors the kernel's bf16-matmul / f32-accumulate
    numerics so the comparison tolerance stays tight, but uses the 'textbook'
    bias-before-BN, two-pass variance and sqrt/divide cosine."""
    def lin(x, w, b):
        return jnp.dot(x.astype(jnp.bfloat16), w.T.astype(jnp.bfloat16),
                       preferred_element_type=jnp.float32) + b[None, :]

    def bn(z):
        mu = z.mean(0, keepdims=True)
        var = ((z - mu) ** 2).mean(0, keepdims=True)
        return (z - mu) / jnp.sqrt(var + BN_EPS)

    def srelu(z, b):
        return jnp.maximum(z, 0.0) - jnp.maximum(2.0 * b[None, :] - z, 0.0)

    def D(p, z):
        num = (p * z).sum(-1)
        den = jnp.maximum(jnp.linalg.norm(p, axis=-1) * jnp.linalg.norm(z, axis=-1),
                          COS_EPS)
        return -(num / den).mean()

    zo = srelu(bn(lin(x1, params["wo_w"], params["wo_b"])), params["wo_b"])
    zt = srelu(bn(lin(x2, params["wo_w"], params["wo_b"])), params["wo_b"])
    zo = srelu(bn(lin(zo, params["wproj_w"], params["wproj_b"])), params["wproj_b"])
    zt = srelu(bn(lin(zt, params["wproj_w"], params["wproj_b"])), params["wproj_b"])
    p1 = lin(zo, params["wp_w"], params["wp_b"])
    p2 = lin(zt, params["wp_w"], params["wp_b"])
    return 0.5 * (D(p1, zt) + D(p2, zo))


if __name__ == "__main__":
    # Small, forward-consistent shapes: batch N=8, input dim p=16, hidden m=32.
    N, P, M = 8, 16, 32

    key = jax.random.PRNGKey(0)
    k = jax.random.split(key, 8)
    x1 = jax.random.normal(k[0], (N, P), jnp.float32)
    x2 = jax.random.normal(k[1], (N, P), jnp.float32)

    # Deterministic synthetic parameters (wo_w stands in for the numpy Wo_init).
    params = {
        "wo_w": 0.3 * jax.random.normal(k[2], (M, P), jnp.float32),
        "wo_b": 0.1 * jax.random.normal(k[3], (M,), jnp.float32),
        "wproj_w": 0.3 * jax.random.normal(k[4], (M, M), jnp.float32),
        "wproj_b": 0.1 * jax.random.normal(k[5], (M,), jnp.float32),
        "wp_w": 0.3 * jax.random.normal(k[6], (M, M), jnp.float32),
        "wp_b": 0.1 * jax.random.normal(k[7], (M,), jnp.float32),
    }

    prepared = prepare_params(params)          # one-time, outside the hot path

    loss = simsiam_forward(x1, x2, prepared)
    loss = jax.block_until_ready(loss)

    ref = reference_forward(x1, x2, params)
    # Kernel and reference share bf16 matmul numerics; remaining differences
    # are f32-level (bias-before-BN vs dropped, fused+clamped variance,
    # rsqrt-vs-divide, reduction order).
    np.testing.assert_allclose(np.asarray(loss), np.asarray(ref),
                               rtol=1e-2, atol=2e-3)

    print("KERNEL_OK")
</pallas_src>

<mosaic_0001>
module attributes {stable_mosaic.version = 11 : i64} {
  func.func @simsiam_kernel(%arg0: memref<16x16xbf16, #tpu.memory_space<vmem>>, %arg1: memref<16x32xbf16, #tpu.memory_space<vmem>>, %arg2: memref<1x32xf32, #tpu.memory_space<vmem>>, %arg3: memref<32x32xbf16, #tpu.memory_space<vmem>>, %arg4: memref<1x32xf32, #tpu.memory_space<vmem>>, %arg5: memref<32x32xbf16, #tpu.memory_space<vmem>>, %arg6: memref<1x32xf32, #tpu.memory_space<vmem>>, %arg7: memref<1x1xf32, #tpu.memory_space<vmem>>) attributes {dimension_semantics = [], scalar_prefetch = 0 : i64, scratch_operands = 0 : i64, tpu.core_type = #tpu.core_type<tc>} {
    %c0 = arith.constant 0 : index
    %c0_0 = arith.constant 0 : index
    %0 = vector.load %arg0[%c0, %c0_0] : memref<16x16xbf16, #tpu.memory_space<vmem>>, vector<16x16xbf16>
    %c0_1 = arith.constant 0 : index
    %c0_2 = arith.constant 0 : index
    %1 = vector.load %arg1[%c0_1, %c0_2] : memref<16x32xbf16, #tpu.memory_space<vmem>>, vector<16x32xbf16>
    %cst = arith.constant dense<0.000000e+00> : vector<16x32xf32>
    %2 = tpu.matmul %0, %1, %cst {dimension_numbers = #tpu.dot_dimension_numbers<[1], [0], [0], [1], [0, 0, 1, 1], [], []>} : vector<16x16xbf16>, vector<16x32xbf16>, vector<16x32xf32> -> vector<16x32xf32>
    %3 = vector.shape_cast %2 : vector<16x32xf32> to vector<2x8x32xf32>
    %cst_3 = arith.constant dense<0.000000e+00> : vector<2x32xf32>
    %4 = vector.multi_reduction <add>, %3, %cst_3 [1] : vector<2x8x32xf32> to vector<2x32xf32>
    %5 = vector.shape_cast %4 : vector<2x32xf32> to vector<2x1x32xf32>
    %cst_4 = arith.constant 8.000000e+00 : f32
    %6 = vector.broadcast %cst_4 : f32 to vector<2x1x32xf32>
    %7 = arith.divf %5, %6 : vector<2x1x32xf32>
    %8 = arith.mulf %3, %3 : vector<2x8x32xf32>
    %cst_5 = arith.constant dense<0.000000e+00> : vector<2x32xf32>
    %9 = vector.multi_reduction <add>, %8, %cst_5 [1] : vector<2x8x32xf32> to vector<2x32xf32>
    %10 = vector.shape_cast %9 : vector<2x32xf32> to vector<2x1x32xf32>
    %cst_6 = arith.constant 8.000000e+00 : f32
    %11 = vector.broadcast %cst_6 : f32 to vector<2x1x32xf32>
    %12 = arith.divf %10, %11 : vector<2x1x32xf32>
    %13 = arith.mulf %7, %7 : vector<2x1x32xf32>
    %14 = arith.subf %12, %13 : vector<2x1x32xf32>
    %cst_7 = arith.constant 0.000000e+00 : f32
    %15 = vector.broadcast %cst_7 : f32 to vector<2x1x32xf32>
    %16 = arith.maximumf %14, %15 : vector<2x1x32xf32>
    %17 = vector.broadcast %7 : vector<2x1x32xf32> to vector<2x8x32xf32>
    %18 = arith.subf %3, %17 : vector<2x8x32xf32>
    %cst_8 = arith.constant 9.99999974E-6 : f32
    %19 = vector.broadcast %cst_8 : f32 to vector<2x1x32xf32>
    %20 = arith.addf %16, %19 : vector<2x1x32xf32>
    %21 = math.rsqrt %20 : vector<2x1x32xf32>
    %22 = vector.broadcast %21 : vector<2x1x32xf32> to vector<2x8x32xf32>
    %23 = arith.mulf %18, %22 : vector<2x8x32xf32>
    %24 = vector.shape_cast %23 : vector<2x8x32xf32> to vector<16x32xf32>
    %c0_9 = arith.constant 0 : index
    %c0_10 = arith.constant 0 : index
    %25 = vector.load %arg2[%c0_9, %c0_10] : memref<1x32xf32, #tpu.memory_space<vmem>>, vector<1x32xf32>
    %cst_11 = arith.constant 2.000000e+00 : f32
    %26 = vector.broadcast %cst_11 : f32 to vector<1x32xf32>
    %27 = arith.mulf %26, %25 : vector<1x32xf32>
    %cst_12 = arith.constant 0.000000e+00 : f32
    %28 = vector.broadcast %cst_12 : f32 to vector<16x32xf32>
    %29 = arith.maximumf %24, %28 : vector<16x32xf32>
    %30 = vector.broadcast %27 : vector<1x32xf32> to vector<16x32xf32>
    %31 = arith.subf %30, %24 : vector<16x32xf32>
    %cst_13 = arith.constant 0.000000e+00 : f32
    %32 = vector.broadcast %cst_13 : f32 to vector<16x32xf32>
    %33 = arith.maximumf %31, %32 : vector<16x32xf32>
    %34 = arith.subf %29, %33 : vector<16x32xf32>
    %35 = arith.truncf %34 : vector<16x32xf32> to vector<16x32xbf16>
    %c0_14 = arith.constant 0 : index
    %c0_15 = arith.constant 0 : index
    %36 = vector.load %arg3[%c0_14, %c0_15] : memref<32x32xbf16, #tpu.memory_space<vmem>>, vector<32x32xbf16>
    %cst_16 = arith.constant dense<0.000000e+00> : vector<16x32xf32>
    %37 = tpu.matmul %35, %36, %cst_16 {dimension_numbers = #tpu.dot_dimension_numbers<[1], [0], [0], [1], [0, 0, 1, 1], [], []>} : vector<16x32xbf16>, vector<32x32xbf16>, vector<16x32xf32> -> vector<16x32xf32>
    %38 = vector.shape_cast %37 : vector<16x32xf32> to vector<2x8x32xf32>
    %cst_17 = arith.constant dense<0.000000e+00> : vector<2x32xf32>
    %39 = vector.multi_reduction <add>, %38, %cst_17 [1] : vector<2x8x32xf32> to vector<2x32xf32>
    %40 = vector.shape_cast %39 : vector<2x32xf32> to vector<2x1x32xf32>
    %cst_18 = arith.constant 8.000000e+00 : f32
    %41 = vector.broadcast %cst_18 : f32 to vector<2x1x32xf32>
    %42 = arith.divf %40, %41 : vector<2x1x32xf32>
    %43 = arith.mulf %38, %38 : vector<2x8x32xf32>
    %cst_19 = arith.constant dense<0.000000e+00> : vector<2x32xf32>
    %44 = vector.multi_reduction <add>, %43, %cst_19 [1] : vector<2x8x32xf32> to vector<2x32xf32>
    %45 = vector.shape_cast %44 : vector<2x32xf32> to vector<2x1x32xf32>
    %cst_20 = arith.constant 8.000000e+00 : f32
    %46 = vector.broadcast %cst_20 : f32 to vector<2x1x32xf32>
    %47 = arith.divf %45, %46 : vector<2x1x32xf32>
    %48 = arith.mulf %42, %42 : vector<2x1x32xf32>
    %49 = arith.subf %47, %48 : vector<2x1x32xf32>
    %cst_21 = arith.constant 0.000000e+00 : f32
    %50 = vector.broadcast %cst_21 : f32 to vector<2x1x32xf32>
    %51 = arith.maximumf %49, %50 : vector<2x1x32xf32>
    %52 = vector.broadcast %42 : vector<2x1x32xf32> to vector<2x8x32xf32>
    %53 = arith.subf %38, %52 : vector<2x8x32xf32>
    %cst_22 = arith.constant 9.99999974E-6 : f32
    %54 = vector.broadcast %cst_22 : f32 to vector<2x1x32xf32>
    %55 = arith.addf %51, %54 : vector<2x1x32xf32>
    %56 = math.rsqrt %55 : vector<2x1x32xf32>
    %57 = vector.broadcast %56 : vector<2x1x32xf32> to vector<2x8x32xf32>
    %58 = arith.mulf %53, %57 : vector<2x8x32xf32>
    %59 = vector.shape_cast %58 : vector<2x8x32xf32> to vector<16x32xf32>
    %c0_23 = arith.constant 0 : index
    %c0_24 = arith.constant 0 : index
    %60 = vector.load %arg4[%c0_23, %c0_24] : memref<1x32xf32, #tpu.memory_space<vmem>>, vector<1x32xf32>
    %cst_25 = arith.constant 2.000000e+00 : f32
    %61 = vector.broadcast %cst_25 : f32 to vector<1x32xf32>
    %62 = arith.mulf %61, %60 : vector<1x32xf32>
    %cst_26 = arith.constant 0.000000e+00 : f32
    %63 = vector.broadcast %cst_26 : f32 to vector<16x32xf32>
    %64 = arith.maximumf %59, %63 : vector<16x32xf32>
    %65 = vector.broadcast %62 : vector<1x32xf32> to vector<16x32xf32>
    %66 = arith.subf %65, %59 : vector<16x32xf32>
    %cst_27 = arith.constant 0.000000e+00 : f32
    %67 = vector.broadcast %cst_27 : f32 to vector<16x32xf32>
    %68 = arith.maximumf %66, %67 : vector<16x32xf32>
    %69 = arith.subf %64, %68 : vector<16x32xf32>
    %70 = arith.truncf %69 : vector<16x32xf32> to vector<16x32xbf16>
    %c0_28 = arith.constant 0 : index
    %c0_29 = arith.constant 0 : index
    %71 = vector.load %arg5[%c0_28, %c0_29] : memref<32x32xbf16, #tpu.memory_space<vmem>>, vector<32x32xbf16>
    %cst_30 = arith.constant dense<0.000000e+00> : vector<16x32xf32>
    %72 = tpu.matmul %70, %71, %cst_30 {dimension_numbers = #tpu.dot_dimension_numbers<[1], [0], [0], [1], [0, 0, 1, 1], [], []>} : vector<16x32xbf16>, vector<32x32xbf16>, vector<16x32xf32> -> vector<16x32xf32>
    %c0_31 = arith.constant 0 : index
    %c0_32 = arith.constant 0 : index
    %73 = vector.load %arg6[%c0_31, %c0_32] : memref<1x32xf32, #tpu.memory_space<vmem>>, vector<1x32xf32>
    %74 = vector.broadcast %73 : vector<1x32xf32> to vector<16x32xf32>
    %75 = arith.addf %72, %74 : vector<16x32xf32>
    %76 = vector.extract_strided_slice %75 {offsets = [0, 0], sizes = [8, 32], strides = [1, 1]} : vector<16x32xf32> to vector<8x32xf32>
    %77 = vector.extract_strided_slice %69 {offsets = [8, 0], sizes = [8, 32], strides = [1, 1]} : vector<16x32xf32> to vector<8x32xf32>
    %78 = arith.mulf %76, %77 : vector<8x32xf32>
    %cst_33 = arith.constant dense<0.000000e+00> : vector<8xf32>
    %79 = vector.multi_reduction <add>, %78, %cst_33 [1] : vector<8x32xf32> to vector<8xf32>
    %80 = vector.shape_cast %79 : vector<8xf32> to vector<8x1xf32>
    %81 = arith.mulf %76, %76 : vector<8x32xf32>
    %cst_34 = arith.constant dense<0.000000e+00> : vector<8xf32>
    %82 = vector.multi_reduction <add>, %81, %cst_34 [1] : vector<8x32xf32> to vector<8xf32>
    %83 = vector.shape_cast %82 : vector<8xf32> to vector<8x1xf32>
    %84 = arith.mulf %77, %77 : vector<8x32xf32>
    %cst_35 = arith.constant dense<0.000000e+00> : vector<8xf32>
    %85 = vector.multi_reduction <add>, %84, %cst_35 [1] : vector<8x32xf32> to vector<8xf32>
    %86 = vector.shape_cast %85 : vector<8xf32> to vector<8x1xf32>
    %87 = arith.mulf %83, %86 : vector<8x1xf32>
    %cst_36 = arith.constant 1.000000e-16 : f32
    %88 = vector.broadcast %cst_36 : f32 to vector<8x1xf32>
    %89 = arith.maximumf %87, %88 : vector<8x1xf32>
    %90 = math.rsqrt %89 : vector<8x1xf32>
    %91 = arith.mulf %80, %90 : vector<8x1xf32>
    %92 = vector.shape_cast %91 : vector<8x1xf32> to vector<1x8x1xf32>
    %cst_37 = arith.constant dense<0.000000e+00> : vector<1xf32>
    %93 = vector.multi_reduction <add>, %92, %cst_37 [1, 2] : vector<1x8x1xf32> to vector<1xf32>
    %94 = vector.shape_cast %93 : vector<1xf32> to vector<1x1x1xf32>
    %95 = vector.extract %94[0, 0, 0] : f32 from vector<1x1x1xf32>
    %96 = vector.extract_strided_slice %75 {offsets = [8, 0], sizes = [8, 32], strides = [1, 1]} : vector<16x32xf32> to vector<8x32xf32>
    %97 = vector.extract_strided_slice %69 {offsets = [0, 0], sizes = [8, 32], strides = [1, 1]} : vector<16x32xf32> to vector<8x32xf32>
    %98 = arith.mulf %96, %97 : vector<8x32xf32>
    %cst_38 = arith.constant dense<0.000000e+00> : vector<8xf32>
    %99 = vector.multi_reduction <add>, %98, %cst_38 [1] : vector<8x32xf32> to vector<8xf32>
    %100 = vector.shape_cast %99 : vector<8xf32> to vector<8x1xf32>
    %101 = arith.mulf %96, %96 : vector<8x32xf32>
    %cst_39 = arith.constant dense<0.000000e+00> : vector<8xf32>
    %102 = vector.multi_reduction <add>, %101, %cst_39 [1] : vector<8x32xf32> to vector<8xf32>
    %103 = vector.shape_cast %102 : vector<8xf32> to vector<8x1xf32>
    %104 = arith.mulf %97, %97 : vector<8x32xf32>
    %cst_40 = arith.constant dense<0.000000e+00> : vector<8xf32>
    %105 = vector.multi_reduction <add>, %104, %cst_40 [1] : vector<8x32xf32> to vector<8xf32>
    %106 = vector.shape_cast %105 : vector<8xf32> to vector<8x1xf32>
    %107 = arith.mulf %103, %106 : vector<8x1xf32>
    %cst_41 = arith.constant 1.000000e-16 : f32
    %108 = vector.broadcast %cst_41 : f32 to vector<8x1xf32>
    %109 = arith.maximumf %107, %108 : vector<8x1xf32>
    %110 = math.rsqrt %109 : vector<8x1xf32>
    %111 = arith.mulf %100, %110 : vector<8x1xf32>
    %112 = vector.shape_cast %111 : vector<8x1xf32> to vector<1x8x1xf32>
    %cst_42 = arith.constant dense<0.000000e+00> : vector<1xf32>
    %113 = vector.multi_reduction <add>, %112, %cst_42 [1, 2] : vector<1x8x1xf32> to vector<1xf32>
    %114 = vector.shape_cast %113 : vector<1xf32> to vector<1x1x1xf32>
    %115 = vector.extract %114[0, 0, 0] : f32 from vector<1x1x1xf32>
    %116 = arith.addf %95, %115 : f32
    %cst_43 = arith.constant 1.600000e+01 : f32
    %117 = arith.divf %116, %cst_43 : f32
    %cst_44 = arith.constant 0.000000e+00 : f32
    %118 = arith.subf %cst_44, %117 : f32
    %119 = vector.broadcast %118 : f32 to vector<1x1xf32>
    %c0_45 = arith.constant 0 : index
    %c0_46 = arith.constant 0 : index
    %120 = vector.load %arg7[%c0_45, %c0_46] : memref<1x1xf32, #tpu.memory_space<vmem>>, vector<1x1xf32>
    tpu.vector_store %arg7[%c0_45, %c0_46], %119 {strides = array<i32>} : memref<1x1xf32, #tpu.memory_space<vmem>>, vector<1x1xf32>,
    return
  }
}

</mosaic_0001>

<llo_original>
// kernel: simsiam_forward.1
$region0: #{simsiam_forward.1}
  #allocation0 [shape = 'u32[]', space=smem, size = 0x4, offset = 0x4, fixed_abs, tag = 'smem constant byte address 0x4 - core index']
  #allocation1 [shape = 'u32[144,128]{1,0:T(1,128)}', space=vmem, size = 0x12000, scoped, tag = 'internal scratch']
  %s0 = inlined_call_operand.hbm [shape: bf16[16,16], index: 0, kind: input, shape index: {}]
  %s1 = inlined_call_operand.hbm [shape: bf16[16,32], index: 1, kind: input, shape index: {}]
  %s2 = inlined_call_operand.hbm [shape: f32[1,32], index: 2, kind: input, shape index: {}]
  %s3 = inlined_call_operand.hbm [shape: bf16[32,32], index: 3, kind: input, shape index: {}]
  %s4 = inlined_call_operand.hbm [shape: f32[1,32], index: 4, kind: input, shape index: {}]
  %s5 = inlined_call_operand.hbm [shape: bf16[32,32], index: 5, kind: input, shape index: {}]
  %s6 = inlined_call_operand.hbm [shape: f32[1,32], index: 6, kind: input, shape index: {}]
  %s7 = inlined_call_operand.hbm [shape: f32[1,1], index: 7, kind: output, shape index: {}]
  %s8 = sld [smem:[#allocation0]]
  $region66: #{simsiam_forward.1} parent=0
    _
  %s10 = ssub.s32 1, %s8
  %s11 = scalar_select 0, %s10, %s8
  $region1: #{simsiam_forward.1} parent=0
    #allocation2 [shape = 'u8[4096]{0}', space=vmem, size = 0x1000, scoped, tag = 'input window, operand 0, single buffered']
    #allocation3 [shape = 's32[1]{0}', space=sflag, size = 0x4, scoped, tag = 'scoped memory for simsiam_forward.1']
    #allocation4 [shape = 's32[1]{0}', space=sflag, size = 0x4, scoped, tag = 'scoped memory for simsiam_forward.1']
    #allocation5 [shape = 'u8[4096]{0}', space=vmem, size = 0x1000, scoped, tag = 'input window, operand 1, single buffered']
    #allocation6 [shape = 's32[1]{0}', space=sflag, size = 0x4, scoped, tag = 'scoped memory for simsiam_forward.1']
    #allocation7 [shape = 'u8[512]{0}', space=vmem, size = 0x400, scoped, tag = 'input window, operand 2, single buffered']
    #allocation8 [shape = 'u8[8192]{0}', space=vmem, size = 0x2000, scoped, tag = 'input window, operand 3, single buffered']
    #allocation9 [shape = 's32[1]{0}', space=sflag, size = 0x4, scoped, tag = 'scoped memory for simsiam_forward.1']
    #allocation10 [shape = 'u8[512]{0}', space=vmem, size = 0x400, scoped, tag = 'input window, operand 4, single buffered']
    #allocation11 [shape = 'u8[8192]{0}', space=vmem, size = 0x2000, scoped, tag = 'input window, operand 5, single buffered']
    #allocation12 [shape = 's32[1]{0}', space=sflag, size = 0x4, scoped, tag = 'scoped memory for simsiam_forward.1']
    #allocation13 [shape = 'u8[512]{0}', space=vmem, size = 0x400, scoped, tag = 'input window, operand 6, single buffered']
    #allocation14 [shape = 'u8[512]{0}', space=vmem, size = 0x400, scoped, tag = 'output window, operand 0, single buffered']
    %12 = vsyncpa [#allocation3], 0
    %13 = vsyncpa [#allocation6], 0
    %14 = vsyncpa [#allocation9], 0
    %15 = vsyncpa [#allocation12], 0
    %16 = vsyncpa [#allocation4], 0
    // Predicated region
    $region2: #{simsiam_forward.1} parent=1 // pred_check
      _
    $region3: #{simsiam_forward.1} parent=1 // pred_check_branch
      %18 = sbr.rel (0) target = $region5
    $region4: #{simsiam_forward.1} parent=1 // pred_region
      %s20 = ssub.s32 128, 128
      %21 = vsyncadd [#allocation3], %s20
      %s22 = sshll.u32 [#allocation2], 4
      %s23 = int_to_ptr.vmem [resolvable:$true] %s22
      %28 = dma.hbm_to_vmem [thread:$0]  %s0, 128, %s23, [#allocation3], 64, 64, 4
    $region5: #{simsiam_forward.1} parent=1 // pred_fallthru
      _
    // Predicated region
    $region6: #{simsiam_forward.1} parent=1 // pred_check
      _
    $region7: #{simsiam_forward.1} parent=1 // pred_check_branch
      %30 = sbr.rel (0) target = $region9
    $region8: #{simsiam_forward.1} parent=1 // pred_region
      %s32 = ssub.s32 128, 128
      %33 = vsyncadd [#allocation6], %s32
      %s34 = sshll.u32 [#allocation5], 4
      %s35 = int_to_ptr.vmem [resolvable:$true] %s34
      %40 = dma.hbm_to_vmem [thread:$0]  %s1, 128, %s35, [#allocation6], 64, 64, 4
    $region9: #{simsiam_forward.1} parent=1 // pred_fallthru
      _
    // Predicated region
    $region10: #{simsiam_forward.1} parent=1 // pred_check
      _
    $region11: #{simsiam_forward.1} parent=1 // pred_check_branch
      %42 = sbr.rel (0) target = $region13
    $region12: #{simsiam_forward.1} parent=1 // pred_region
      %s44 = ssub.s32 16, 16
      %45 = vsyncadd [#allocation6], %s44
      %s47 = sshll.u32 [#allocation7], 4
      %s48 = int_to_ptr.vmem [resolvable:$true] %s47
      %50 = dma.hbm_to_vmem [thread:$0]  %s2, 16, %s48, [#allocation6]
    $region13: #{simsiam_forward.1} parent=1 // pred_fallthru
      _
    // Predicated region
    $region14: #{simsiam_forward.1} parent=1 // pred_check
      _
    $region15: #{simsiam_forward.1} parent=1 // pred_check_branch
      %52 = sbr.rel (0) target = $region17
    $region16: #{simsiam_forward.1} parent=1 // pred_region
      %s54 = ssub.s32 256, 256
      %55 = vsyncadd [#allocation9], %s54
      %s56 = sshll.u32 [#allocation8], 4
      %s57 = int_to_ptr.vmem [resolvable:$true] %s56
      %62 = dma.hbm_to_vmem [thread:$0]  %s3, 256, %s57, [#allocation9], 64, 64, 4
    $region17: #{simsiam_forward.1} parent=1 // pred_fallthru
      _
    // Predicated region
    $region18: #{simsiam_forward.1} parent=1 // pred_check
      _
    $region19: #{simsiam_forward.1} parent=1 // pred_check_branch
      %64 = sbr.rel (0) target = $region21
    $region20: #{simsiam_forward.1} parent=1 // pred_region
      %s66 = ssub.s32 16, 16
      %67 = vsyncadd [#allocation9], %s66
      %s69 = sshll.u32 [#allocation10], 4
      %s70 = int_to_ptr.vmem [resolvable:$true] %s69
      %72 = dma.hbm_to_vmem [thread:$0]  %s4, 16, %s70, [#allocation9]
    $region21: #{simsiam_forward.1} parent=1 // pred_fallthru
      _
    // Predicated region
    $region22: #{simsiam_forward.1} parent=1 // pred_check
      _
    $region23: #{simsiam_forward.1} parent=1 // pred_check_branch
      %74 = sbr.rel (0) target = $region25
    $region24: #{simsiam_forward.1} parent=1 // pred_region
      %s76 = ssub.s32 256, 256
      %77 = vsyncadd [#allocation12], %s76
      %s78 = sshll.u32 [#allocation11], 4
      %s79 = int_to_ptr.vmem [resolvable:$true] %s78
      %84 = dma.hbm_to_vmem [thread:$0]  %s5, 256, %s79, [#allocation12], 64, 64, 4
    $region25: #{simsiam_forward.1} parent=1 // pred_fallthru
      _
    // Predicated region
    $region26: #{simsiam_forward.1} parent=1 // pred_check
      _
    $region27: #{simsiam_forward.1} parent=1 // pred_check_branch
      %86 = sbr.rel (0) target = $region29
    $region28: #{simsiam_forward.1} parent=1 // pred_region
      %s88 = ssub.s32 16, 16
      %89 = vsyncadd [#allocation12], %s88
      %s91 = sshll.u32 [#allocation13], 4
      %s92 = int_to_ptr.vmem [resolvable:$true] %s91
      %94 = dma.hbm_to_vmem [thread:$0]  %s6, 16, %s92, [#allocation12]
    $region29: #{simsiam_forward.1} parent=1 // pred_fallthru
      _
    // Predicated region
    $region30: #{simsiam_forward.1} parent=1 // pred_check
      _
    $region31: #{simsiam_forward.1} parent=1 // pred_check_branch
      %96 = sbr.rel (0) target = $region33
    $region32: #{simsiam_forward.1} parent=1 // pred_region
      %97 = dma.done [#allocation3], 128
    $region33: #{simsiam_forward.1} parent=1 // pred_fallthru
      _
    // Predicated region
    $region34: #{simsiam_forward.1} parent=1 // pred_check
      _
    $region35: #{simsiam_forward.1} parent=1 // pred_check_branch
      %99 = sbr.rel (0) target = $region37
    $region36: #{simsiam_forward.1} parent=1 // pred_region
      %100 = dma.done [#allocation6], 128
    $region37: #{simsiam_forward.1} parent=1 // pred_fallthru
      _
    // Predicated region
    $region38: #{simsiam_forward.1} parent=1 // pred_check
      _
    $region39: #{simsiam_forward.1} parent=1 // pred_check_branch
      %102 = sbr.rel (0) target = $region41
    $region40: #{simsiam_forward.1} parent=1 // pred_region
      %103 = dma.done [#allocation6], 16
    $region41: #{simsiam_forward.1} parent=1 // pred_fallthru
      _
    // Predicated region
    $region42: #{simsiam_forward.1} parent=1 // pred_check
      _
    $region43: #{simsiam_forward.1} parent=1 // pred_check_branch
      %105 = sbr.rel (0) target = $region45
    $region44: #{simsiam_forward.1} parent=1 // pred_region
      %106 = dma.done [#allocation9], 256
    $region45: #{simsiam_forward.1} parent=1 // pred_fallthru
      _
    // Predicated region
    $region46: #{simsiam_forward.1} parent=1 // pred_check
      _
    $region47: #{simsiam_forward.1} parent=1 // pred_check_branch
      %108 = sbr.rel (0) target = $region49
    $region48: #{simsiam_forward.1} parent=1 // pred_region
      %109 = dma.done [#allocation9], 16
    $region49: #{simsiam_forward.1} parent=1 // pred_fallthru
      _
    // Predicated region
    $region50: #{simsiam_forward.1} parent=1 // pred_check
      _
    $region51: #{simsiam_forward.1} parent=1 // pred_check_branch
      %111 = sbr.rel (0) target = $region53
    $region52: #{simsiam_forward.1} parent=1 // pred_region
      %112 = dma.done [#allocation12], 256
    $region53: #{simsiam_forward.1} parent=1 // pred_fallthru
      _
    // Predicated region
    $region54: #{simsiam_forward.1} parent=1 // pred_check
      _
    $region55: #{simsiam_forward.1} parent=1 // pred_check_branch
      %114 = sbr.rel (0) target = $region57
    $region56: #{simsiam_forward.1} parent=1 // pred_region
      %115 = dma.done [#allocation12], 16
    $region57: #{simsiam_forward.1} parent=1 // pred_fallthru
      _
    %v117 = vld [vmem:[#allocation2] sm:$0xf]
    %v118 = vld [vmem:[#allocation2 + $0x4] sm:$0xf]
    %v119 = vld [vmem:[#allocation5] sm:$0xf]
    %v120 = vld [vmem:[#allocation5 + $0x4] sm:$0xf]
    %v123 = vunpack.c.l.b16 %v117
    %v124 = vunpack.c.l.b16 %v118
    %v125 = vpack.c.b16 %v124, %v123
    %v128 = vunpack.c.l.b16 %v119
    %v129 = vunpack.c.l.b16 %v120
    %v130 = vpack.c.b16 %v129, %v128
    %vm132 = vcmask 130048
    %v134 = vsel %vm132, %v125, 0
    %136 = vmatprep.subr.bf16.mxu0 0
    %137 = vmatpush1.bf16.msra.mxu0 %v130
    %138 = vmatprep.subr.bf16.mxu0 0
    %139 = vmatpush1.bf16.msra.mxu0 0
    %140 = vmatprep.subr.bf16.mxu0 0
    %141 = vmatpush1.bf16.msra.mxu0 0
    %142 = vmatprep.subr.bf16.mxu0 0
    %143 = vmatpush1.bf16.msra.mxu0 0
    %144 = vmatprep.subr.bf16.mxu0 0
    %145 = vmatpush1.bf16.msra.mxu0 0
    %146 = vmatprep.subr.bf16.mxu0 0
    %147 = vmatpush1.bf16.msra.mxu0 0
    %148 = vmatprep.subr.bf16.mxu0 0
    %149 = vmatpush1.bf16.msra.mxu0 0
    %150 = vmatprep.subr.bf16.mxu0 0
    %151 = vmatpush1.bf16.msra.mxu0 0
    %152 = vmatprep.subr.bf16.mxu0 0
    %153 = vmatpush1.bf16.msra.mxu0 0
    %154 = vmatprep.subr.bf16.mxu0 0
    %155 = vmatpush1.bf16.msra.mxu0 0
    %156 = vmatprep.subr.bf16.mxu0 0
    %157 = vmatpush1.bf16.msra.mxu0 0
    %158 = vmatprep.subr.bf16.mxu0 0
    %159 = vmatpush1.bf16.msra.mxu0 0
    %160 = vmatprep.subr.bf16.mxu0 0
    %161 = vmatpush1.bf16.msra.mxu0 0
    %162 = vmatprep.subr.bf16.mxu0 0
    %163 = vmatpush1.bf16.msra.mxu0 0
    %164 = vmatprep.subr.bf16.mxu0 0
    %165 = vmatpush1.bf16.msra.mxu0 0
    %166 = vmatprep.subr.bf16.mxu0 0
    %167 = vmatpush1.bf16.msra.mxu0 0
    %168 = vmatprep.mubr.bf16.mxu0 0
    %169 = vmatmul.mubr.bf16.gmra.mrb[0].mxu0 %v134
    %v170 = vpop.f32.mrb[0].mxu0
    %v171 = vadd.f32 0.0, %v170
    %v172 = vpop.f32.mrb[0].mxu0
    %v173 = vpop.f32.mrb[0].mxu0
    %v174 = vadd.f32 0.0, %v173
    %v175 = vpop.f32.mrb[0].mxu0
    %176 = vdwg.mxu0
    %vm177 = vcmask 261120
    %v178 = vsel %vm177, %v171, 0.0
    %v179 = vrot.slane %v178, 4
    %v180 = vadd.f32 %v178, %v179
    %v181 = vrot.slane %v180, 2
    %v182 = vadd.f32 %v180, %v181
    %v183 = vrot.slane %v182, 1
    %v184 = vadd.f32 %v182, %v183
    %v185 = vsel %vm177, %v174, 0.0
    %v186 = vrot.slane %v185, 4
    %v187 = vadd.f32 %v185, %v186
    %v188 = vrot.slane %v187, 2
    %v189 = vadd.f32 %v187, %v188
    %v190 = vrot.slane %v189, 1
    %v191 = vadd.f32 %v189, %v190
    %v192 = vrcp.pop 8.0
    %v193 = vmul.f32 %v184, %v192
    %v194 = vmul.f32 %v191, %v192
    %v195 = vmul.f32 %v171, %v171
    %v196 = vmul.f32 %v174, %v174
    %v197 = vsel %vm177, %v195, 0.0
    %v198 = vrot.slane %v197, 4
    %v199 = vadd.f32 %v197, %v198
    %v200 = vrot.slane %v199, 2
    %v201 = vadd.f32 %v199, %v200
    %v202 = vrot.slane %v201, 1
    %v203 = vadd.f32 %v201, %v202
    %v204 = vsel %vm177, %v196, 0.0
    %v205 = vrot.slane %v204, 4
    %v206 = vadd.f32 %v204, %v205
    %v207 = vrot.slane %v206, 2
    %v208 = vadd.f32 %v206, %v207
    %v209 = vrot.slane %v208, 1
    %v210 = vadd.f32 %v208, %v209
    %v211 = vmul.f32 %v203, %v192
    %v212 = vmul.f32 %v210, %v192
    %v213 = vmul.f32 %v193, %v193
    %v214 = vmul.f32 %v194, %v194
    %v215 = vsub.f32 %v211, %v213
    %v216 = vsub.f32 %v212, %v214
    %v217 = vmax.f32 %v215, 0.0
    %v218 = vmax.f32 %v216, 0.0
    %v219 = vsub.f32 %v171, %v193
    %v220 = vsub.f32 %v174, %v194
    %v221 = vadd.f32 %v217, 1e-05
    %v222 = vadd.f32 %v218, 1e-05
    %v223 = vrsqrt.pop %v221
    %v224 = vrsqrt.pop %v222
    %v225 = vmul.f32 %v219, %v223
    %v226 = vmul.f32 %v220, %v224
    %v227 = vld [vmem:[#allocation7] sm:$0x1]
    %v228 = vmul.f32 %v227, 2.0
    %v229 = vmax.f32 %v225, 0.0
    %v230 = vmax.f32 %v226, 0.0
    %v232 = vlaneseq
    %v233 = vshrl.u32 %v232, 7
    %v234 = vsub.s32 0, %v233
    %v235 = vrot.slane %v228, %v234
    %v237 = vsub.f32 %v235, %v225
    %v238 = vsub.f32 %v235, %v226
    %v239 = vmax.f32 %v237, 0.0
    %v240 = vmax.f32 %v238, 0.0
    %v241 = vsub.f32 %v229, %v239
    %v242 = vsub.f32 %v230, %v240
    %v243 = vpack.c.bf16 %v242, %v241
    %v244 = vld [vmem:[#allocation8] sm:$0xf]
    %v245 = vld [vmem:[#allocation8 + $0x4] sm:$0xf]
    %v246 = vld [vmem:[#allocation8 + $0x8] sm:$0xf]
    %v247 = vld [vmem:[#allocation8 + $0xc] sm:$0xf]
    %v252 = vunpack.c.l.b16 %v244
    %v253 = vunpack.c.l.b16 %v245
    %v254 = vunpack.c.l.b16 %v246
    %v255 = vunpack.c.l.b16 %v247
    %v256 = vpack.c.b16 %v253, %v252
    %v257 = vpack.c.b16 %v255, %v254
    %v261 = vsel %vm177, %v243, 0
    %263 = vmatprep.subr.bf16.mxu0 0
    %264 = vmatpush1.bf16.msra.mxu0 %v256
    %265 = vmatprep.subr.bf16.mxu0 0
    %266 = vmatpush1.bf16.msra.mxu0 %v257
    %267 = vmatprep.subr.bf16.mxu0 0
    %268 = vmatpush1.bf16.msra.mxu0 0
    %269 = vmatprep.subr.bf16.mxu0 0
    %270 = vmatpush1.bf16.msra.mxu0 0
    %271 = vmatprep.subr.bf16.mxu0 0
    %272 = vmatpush1.bf16.msra.mxu0 0
    %273 = vmatprep.subr.bf16.mxu0 0
    %274 = vmatpush1.bf16.msra.mxu0 0
    %275 = vmatprep.subr.bf16.mxu0 0
    %276 = vmatpush1.bf16.msra.mxu0 0
    %277 = vmatprep.subr.bf16.mxu0 0
    %278 = vmatpush1.bf16.msra.mxu0 0
    %279 = vmatprep.subr.bf16.mxu0 0
    %280 = vmatpush1.bf16.msra.mxu0 0
    %281 = vmatprep.subr.bf16.mxu0 0
    %282 = vmatpush1.bf16.msra.mxu0 0
    %283 = vmatprep.subr.bf16.mxu0 0
    %284 = vmatpush1.bf16.msra.mxu0 0
    %285 = vmatprep.subr.bf16.mxu0 0
    %286 = vmatpush1.bf16.msra.mxu0 0
    %287 = vmatprep.subr.bf16.mxu0 0
    %288 = vmatpush1.bf16.msra.mxu0 0
    %289 = vmatprep.subr.bf16.mxu0 0
    %290 = vmatpush1.bf16.msra.mxu0 0
    %291 = vmatprep.subr.bf16.mxu0 0
    %292 = vmatpush1.bf16.msra.mxu0 0
    %293 = vmatprep.subr.bf16.mxu0 0
    %294 = vmatpush1.bf16.msra.mxu0 0
    %295 = vmatprep.mubr.bf16.mxu0 0
    %296 = vmatmul.mubr.bf16.gmra.mrb[0].mxu0 %v261
    %v297 = vpop.f32.mrb[0].mxu0
    %v298 = vadd.f32 0.0, %v297
    %v299 = vpop.f32.mrb[0].mxu0
    %v300 = vpop.f32.mrb[0].mxu0
    %v301 = vadd.f32 0.0, %v300
    %v302 = vpop.f32.mrb[0].mxu0
    %303 = vdwg.mxu0
    %v304 = vsel %vm177, %v298, 0.0
    %v305 = vrot.slane %v304, 4
    %v306 = vadd.f32 %v304, %v305
    %v307 = vrot.slane %v306, 2
    %v308 = vadd.f32 %v306, %v307
    %v309 = vrot.slane %v308, 1
    %v310 = vadd.f32 %v308, %v309
    %v311 = vsel %vm177, %v301, 0.0
    %v312 = vrot.slane %v311, 4
    %v313 = vadd.f32 %v311, %v312
    %v314 = vrot.slane %v313, 2
    %v315 = vadd.f32 %v313, %v314
    %v316 = vrot.slane %v315, 1
    %v317 = vadd.f32 %v315, %v316
    %v318 = vmul.f32 %v310, %v192
    %v319 = vmul.f32 %v317, %v192
    %v320 = vmul.f32 %v298, %v298
    %v321 = vmul.f32 %v301, %v301
    %v322 = vsel %vm177, %v320, 0.0
    %v323 = vrot.slane %v322, 4
    %v324 = vadd.f32 %v322, %v323
    %v325 = vrot.slane %v324, 2
    %v326 = vadd.f32 %v324, %v325
    %v327 = vrot.slane %v326, 1
    %v328 = vadd.f32 %v326, %v327
    %v329 = vsel %vm177, %v321, 0.0
    %v330 = vrot.slane %v329, 4
    %v331 = vadd.f32 %v329, %v330
    %v332 = vrot.slane %v331, 2
    %v333 = vadd.f32 %v331, %v332
    %v334 = vrot.slane %v333, 1
    %v335 = vadd.f32 %v333, %v334
    %v336 = vmul.f32 %v328, %v192
    %v337 = vmul.f32 %v335, %v192
    %v338 = vmul.f32 %v318, %v318
    %v339 = vmul.f32 %v319, %v319
    %v340 = vsub.f32 %v336, %v338
    %v341 = vsub.f32 %v337, %v339
    %v342 = vmax.f32 %v340, 0.0
    %v343 = vmax.f32 %v341, 0.0
    %v344 = vsub.f32 %v298, %v318
    %v345 = vsub.f32 %v301, %v319
    %v346 = vadd.f32 %v342, 1e-05
    %v347 = vadd.f32 %v343, 1e-05
    %v348 = vrsqrt.pop %v346
    %v349 = vrsqrt.pop %v347
    %v350 = vmul.f32 %v344, %v348
    %v351 = vmul.f32 %v345, %v349
    %v352 = vld [vmem:[#allocation10] sm:$0x1]
    %v353 = vmul.f32 %v352, 2.0
    %v354 = vmax.f32 %v350, 0.0
    %v355 = vmax.f32 %v351, 0.0
    %v357 = vlaneseq
    %v358 = vshrl.u32 %v357, 7
    %v359 = vsub.s32 0, %v358
    %v360 = vrot.slane %v353, %v359
    %v362 = vsub.f32 %v360, %v350
    %v363 = vsub.f32 %v360, %v351
    %v364 = vmax.f32 %v362, 0.0
    %v365 = vmax.f32 %v363, 0.0
    %v366 = vsub.f32 %v354, %v364
    %v367 = vsub.f32 %v355, %v365
    %v368 = vpack.c.bf16 %v367, %v366
    %v369 = vld [vmem:[#allocation11] sm:$0xf]
    %v370 = vld [vmem:[#allocation11 + $0x4] sm:$0xf]
    %v371 = vld [vmem:[#allocation11 + $0x8] sm:$0xf]
    %v372 = vld [vmem:[#allocation11 + $0xc] sm:$0xf]
    %v373 = vld [vmem:[#allocation13] sm:$0x1]
    %v375 = vlaneseq
    %v376 = vshrl.u32 %v375, 7
    %v377 = vsub.s32 0, %v376
    %v378 = vrot.slane %v373, %v377
    %v384 = vunpack.c.l.b16 %v369
    %v385 = vunpack.c.l.b16 %v370
    %v386 = vunpack.c.l.b16 %v371
    %v387 = vunpack.c.l.b16 %v372
    %v388 = vpack.c.b16 %v385, %v384
    %v389 = vpack.c.b16 %v387, %v386
    %v393 = vsel %vm177, %v368, 0
    %395 = vmatprep.subr.bf16.mxu0 0
    %396 = vmatpush1.bf16.msra.mxu0 %v388
    %397 = vmatprep.subr.bf16.mxu0 0
    %398 = vmatpush1.bf16.msra.mxu0 %v389
    %399 = vmatprep.subr.bf16.mxu0 0
    %400 = vmatpush1.bf16.msra.mxu0 0
    %401 = vmatprep.subr.bf16.mxu0 0
    %402 = vmatpush1.bf16.msra.mxu0 0
    %403 = vmatprep.subr.bf16.mxu0 0
    %404 = vmatpush1.bf16.msra.mxu0 0
    %405 = vmatprep.subr.bf16.mxu0 0
    %406 = vmatpush1.bf16.msra.mxu0 0
    %407 = vmatprep.subr.bf16.mxu0 0
    %408 = vmatpush1.bf16.msra.mxu0 0
    %409 = vmatprep.subr.bf16.mxu0 0
    %410 = vmatpush1.bf16.msra.mxu0 0
    %411 = vmatprep.subr.bf16.mxu0 0
    %412 = vmatpush1.bf16.msra.mxu0 0
    %413 = vmatprep.subr.bf16.mxu0 0
    %414 = vmatpush1.bf16.msra.mxu0 0
    %415 = vmatprep.subr.bf16.mxu0 0
    %416 = vmatpush1.bf16.msra.mxu0 0
    %417 = vmatprep.subr.bf16.mxu0 0
    %418 = vmatpush1.bf16.msra.mxu0 0
    %419 = vmatprep.subr.bf16.mxu0 0
    %420 = vmatpush1.bf16.msra.mxu0 0
    %421 = vmatprep.subr.bf16.mxu0 0
    %422 = vmatpush1.bf16.msra.mxu0 0
    %423 = vmatprep.subr.bf16.mxu0 0
    %424 = vmatpush1.bf16.msra.mxu0 0
    %425 = vmatprep.subr.bf16.mxu0 0
    %426 = vmatpush1.bf16.msra.mxu0 0
    %427 = vmatprep.mubr.bf16.mxu0 0
    %428 = vmatmul.mubr.bf16.gmra.mrb[0].mxu0 %v393
    %v429 = vpop.f32.mrb[0].mxu0
    %v430 = vadd.f32 %v378, %v429
    %v431 = vpop.f32.mrb[0].mxu0
    %v432 = vpop.f32.mrb[0].mxu0
    %v433 = vadd.f32 %v378, %v432
    %v434 = vpop.f32.mrb[0].mxu0
    %435 = vdwg.mxu0
    %v436 = vmul.f32 %v430, %v367
    %v437 = vsel %vm177, %v436, 0.0
    %438 = vadd.xlane.f32.xlu0 %v437
    %v439 = vpop.xlane.xlu0 %438
    %v440 = vmul.f32 %v430, %v430
    %v441 = vsel %vm177, %v440, 0.0
    %442 = vadd.xlane.f32.xlu0 %v441
    %v443 = vpop.xlane.xlu0 %442
    %v444 = vmul.f32 %v367, %v367
    %v445 = vsel %vm177, %v444, 0.0
    %446 = vadd.xlane.f32.xlu0 %v445
    %v447 = vpop.xlane.xlu0 %446
    %v448 = vmul.f32 %v443, %v447
    %v449 = vmax.f32 %v448, 1e-16
    %v450 = vrsqrt.pop %v449
    %v451 = vmul.f32 %v439, %v450
    %vm452 = vcmask 7168
    %v453 = vsel %vm452, %v451, 0.0
    %454 = vadd.xlane.f32.xlu0 %v453
    %v455 = vpop.xlane.xlu0 %454
    %v456 = vrot.slane %v455, 4
    %v457 = vadd.f32 %v455, %v456
    %v458 = vrot.slane %v457, 2
    %v459 = vadd.f32 %v457, %v458
    %v460 = vrot.slane %v459, 1
    %v461 = vadd.f32 %v459, %v460
    %s462 = vtos %v461
    %v463 = vmul.f32 %v433, %v366
    %v464 = vsel %vm177, %v463, 0.0
    %465 = vadd.xlane.f32.xlu0 %v464
    %v466 = vpop.xlane.xlu0 %465
    %v467 = vmul.f32 %v433, %v433
    %v468 = vsel %vm177, %v467, 0.0
    %469 = vadd.xlane.f32.xlu0 %v468
    %v470 = vpop.xlane.xlu0 %469
    %v471 = vmul.f32 %v366, %v366
    %v472 = vsel %vm177, %v471, 0.0
    %473 = vadd.xlane.f32.xlu0 %v472
    %v474 = vpop.xlane.xlu0 %473
    %v475 = vmul.f32 %v470, %v474
    %v476 = vmax.f32 %v475, 1e-16
    %v477 = vrsqrt.pop %v476
    %v478 = vmul.f32 %v466, %v477
    %v479 = vsel %vm452, %v478, 0.0
    %480 = vadd.xlane.f32.xlu0 %v479
    %v481 = vpop.xlane.xlu0 %480
    %v482 = vrot.slane %v481, 4
    %v483 = vadd.f32 %v481, %v482
    %v484 = vrot.slane %v483, 2
    %v485 = vadd.f32 %v483, %v484
    %v486 = vrot.slane %v485, 1
    %v487 = vadd.f32 %v485, %v486
    %s488 = vtos %v487
    %s489 = sadd.f32 %s462, %s488
    %v490 = vrcp.pop 16.0
    %s491 = vtos %v490
    %s492 = smul.f32 %s489, %s491
    %s493 = ssub.f32 0.0, %s492
    %v494 = vstv %s493
    %vm495 = vcmask 0
    %496 = vst.msk [vmem:[#allocation14] sm:$0x1] %vm495, %v494
    // Predicated region
    $region58: #{simsiam_forward.1} parent=1 // pred_check
      _
    $region59: #{simsiam_forward.1} parent=1 // pred_check_branch
      %498 = sbr.rel (0) target = $region61
    $region60: #{simsiam_forward.1} parent=1 // pred_region
      %s500 = ssub.s32 16, 16
      %501 = vsyncadd [#allocation4], %s500
      %s503 = sshll.u32 [#allocation14], 4
      %s504 = int_to_ptr.vmem [resolvable:$true] %s503
      %506 = dma.vmem_to_hbm [thread:$0]  %s504, 16, %s7, [#allocation4]
    $region61: #{simsiam_forward.1} parent=1 // pred_fallthru
      _
    // Predicated region
    $region62: #{simsiam_forward.1} parent=1 // pred_check
      _
    $region63: #{simsiam_forward.1} parent=1 // pred_check_branch
      %508 = sbr.rel (0) target = $region65
    $region64: #{simsiam_forward.1} parent=1 // pred_region
      %509 = dma.done [#allocation4], 16
    $region65: #{simsiam_forward.1} parent=1 // pred_fallthru
      _
    %510 = vsyncpa [#allocation3], 1
    %511 = vsyncpa [#allocation6], 1
    %512 = vsyncpa [#allocation9], 1
    %513 = vsyncpa [#allocation12], 1
    %514 = vsyncpa [#allocation4], 1

</llo_original>
